<compile_context>
chip_gen: v7x
topology: tpu7x:2x2x1
jax: 0.10.0
libtpu: 0.0.40
codegen_flags: <defaults>
</compile_context>

<pallas_src>
import jax
import jax.numpy as jnp
from jax.experimental import pallas as pl
from jax.experimental.pallas import tpu as pltpu

LANE = 128
_DIMS = [(2, 20), (20, 50), (50, 50), (50, 50), (50, 20), (20, 1)]  # (in, out)


def _round_up(v, m):
    return ((v + m - 1) // m) * m


# Static row offsets of each layer's (out, in) weight block inside the packed
# slab; offsets are 8-aligned so in-kernel static slices start on a sublane tile.
_ROW_OFF = []
_off = 0
for _fi, _fo in _DIMS:
    _ROW_OFF.append(_off)
    _off = _round_up(_off + _fo, 8)
_TOTAL_ROWS = _round_up(_off, 8)                 # 224
_BIAS_COL = max(fi for fi, _ in _DIMS)           # 50
_SLAB_COLS = _BIAS_COL + 1                       # 51 (weights in cols [0:in], bias in col 50)


def mlp_kernel(xt_ref, p_ref, o_ref):
    """Whole MLP forward for one lane-tile of samples.

    xt_ref: (2, tile)  -- row 0 = x, row 1 = t (batch on lanes).
    p_ref : (_TOTAL_ROWS, _SLAB_COLS) packed parameter slab (single DMA).
    o_ref : (1, tile) lane-dense output.
    """
    xt = xt_ref[...]                                   # (2, tile)
    xr = xt[0:1, :]                                    # (1, tile)
    tr = xt[1:2, :]                                    # (1, tile)

    # Layer 1 (2 -> 20): fold the K=2 matmul into two exact-f32 broadcast FMAs.
    fi, fo = _DIMS[0]
    r0 = _ROW_OFF[0]
    w1 = p_ref[r0:r0 + fo, 0:fi]                       # (20, 2)
    b1 = p_ref[r0:r0 + fo, _BIAS_COL:_BIAS_COL + 1]    # (20, 1)
    h = jnp.tanh(w1[:, 0:1] * xr + w1[:, 1:2] * tr + b1)       # (20, tile)

    # Layers 2..6: MXU matmuls (f32 accumulation), tanh on the EUP slot.
    for li in range(1, len(_DIMS)):
        fi, fo = _DIMS[li]
        r0 = _ROW_OFF[li]
        w = p_ref[r0:r0 + fo, 0:fi]                    # (fo, fi) static slab view
        b = p_ref[r0:r0 + fo, _BIAS_COL:_BIAS_COL + 1] # (fo, 1)
        h = jnp.dot(w, h, preferred_element_type=jnp.float32) + b
        if li < len(_DIMS) - 1:
            h = jnp.tanh(h)

    o_ref[...] = h.astype(o_ref.dtype)                 # (1, tile) lane-dense store


def init_params(key):
    """Deterministic init matching PyTorch nn.Linear shapes.
    Returns list of (W, b) with W as (out, in) (== torch weight) and b as (out,)."""
    params = []
    for (fan_in, fan_out) in _DIMS:
        key, kw, kb = jax.random.split(key, 3)
        bound = 1.0 / (fan_in ** 0.5)  # PyTorch default Linear init range
        w = jax.random.uniform(kw, (fan_out, fan_in), jnp.float32, -bound, bound)
        b = jax.random.uniform(kb, (fan_out,), jnp.float32, -bound, bound)
        params.append((w, b))
    return params


def pack_params(params):
    """Pack all weights/biases into a single (rows, 51) f32 slab."""
    slab = jnp.zeros((_TOTAL_ROWS, _SLAB_COLS), jnp.float32)
    for (w, b), (fi, fo), r0 in zip(params, _DIMS, _ROW_OFF):
        slab = slab.at[r0:r0 + fo, 0:fi].set(w)
        slab = slab.at[r0:r0 + fo, _BIAS_COL].set(b)
    return slab


def _choose_tiling(n, max_tile):
    """Pick (tile, padded): tile multiple of 128, padded = grid * tile >= n.
    Forces >= 2 grid steps whenever there are >= 2 lane groups so the
    'parallel' grid axis can shard across both v7x TensorCores."""
    lane_groups = pl.cdiv(n, LANE)
    if lane_groups <= 1:
        return LANE, LANE
    num_tiles = max(2, pl.cdiv(lane_groups * LANE, max_tile))
    tile = pl.cdiv(lane_groups, num_tiles) * LANE
    return tile, tile * num_tiles


def model_forward(x, t, params_slab, max_tile=4096):
    """x: (N,1) f32, t: (N,1) f32 -> (N,1) f32."""
    N = x.shape[0]

    # One stacked lane-major input: (2, N).
    xt = jnp.concatenate(
        [jnp.asarray(x, jnp.float32).reshape(1, N),
         jnp.asarray(t, jnp.float32).reshape(1, N)], axis=0)

    tile, padded = _choose_tiling(N, max_tile)
    if padded != N:
        xt = jnp.pad(xt, ((0, 0), (0, padded - N)))
    grid = padded // tile

    # Advisory cost hint so XLA schedules this small custom call sensibly.
    flops = 2 * padded * sum(fi * fo for fi, fo in _DIMS)
    transcendentals = padded * sum(fo for _, fo in _DIMS[:-1])
    slab_bytes = _TOTAL_ROWS * _SLAB_COLS * 4
    cost = pl.CostEstimate(flops=flops,
                           transcendentals=transcendentals,
                           bytes_accessed=padded * 12 + slab_bytes)

    out = pl.pallas_call(
        mlp_kernel,
        out_shape=jax.ShapeDtypeStruct((1, padded), jnp.float32),
        grid_spec=pltpu.PrefetchScalarGridSpec(
            num_scalar_prefetch=0,
            grid=(grid,),
            in_specs=[
                pl.BlockSpec((2, tile), lambda i: (0, i)),                    # stacked x/t
                pl.BlockSpec((_TOTAL_ROWS, _SLAB_COLS), lambda i: (0, 0)),    # param slab
            ],
            out_specs=pl.BlockSpec((1, tile), lambda i: (0, i)),
        ),
        compiler_params=pltpu.CompilerParams(
            dimension_semantics=("parallel",),
            vmem_limit_bytes=32 * 1024 * 1024),
        cost_estimate=cost,
    )(xt, params_slab)

    return out[:, :N].reshape(N, 1)


def reference_forward(x, t, params):
    h = jnp.concatenate([x, t], axis=1)          # (N, 2)
    for i, (w, b) in enumerate(params):          # w: (out, in), b: (out,)
        h = jnp.dot(h, w.T) + b.reshape(1, -1)
        if i < len(params) - 1:
            h = jnp.tanh(h)
    return h


if __name__ == "__main__":
    key = jax.random.PRNGKey(0)
    params = init_params(key)
    slab = pack_params(params)

    # Inputs consistent with the module's usage: x = linspace(0, R, 256).view(-1, 1)
    R = 40.0
    N = 256
    x = jnp.linspace(0.0, R, N, dtype=jnp.float32).reshape(-1, 1)
    t = jax.random.uniform(jax.random.PRNGKey(1), (N, 1), jnp.float32, 0.0, 1.0)

    out = jax.block_until_ready(model_forward(x, t, slab))
    ref = reference_forward(x, t, params)

    assert out.shape == (N, 1) and out.dtype == jnp.float32
    assert jnp.allclose(out, ref, atol=1e-4, rtol=1e-4), \
        float(jnp.max(jnp.abs(out - ref)))

    print("KERNEL_OK")
</pallas_src>

<mosaic_0001>
module attributes {stable_mosaic.version = 11 : i64} {
  func.func @mlp_kernel(%arg0: i32, %arg1: memref<2x128xf32, #tpu.memory_space<vmem>>, %arg2: memref<224x51xf32, #tpu.memory_space<vmem>>, %arg3: memref<1x128xf32, #tpu.memory_space<vmem>>) attributes {dimension_semantics = [#tpu.dimension_semantics<parallel>], iteration_bounds = array<i64: 2>, scalar_prefetch = 0 : i64, scratch_operands = 0 : i64, tpu.core_type = #tpu.core_type<tc>, window_params = [{transform_indices = @transform_0, window_bounds = array<i64: 2, 128>}, {pipeline_mode = #tpu.pipeline_mode<synchronous>, transform_indices = @transform_1, window_bounds = array<i64: 224, 51>}, {transform_indices = @transform_2, window_bounds = array<i64: 1, 128>}]} {
    %c0 = arith.constant 0 : index
    %c0_0 = arith.constant 0 : index
    %0 = vector.load %arg1[%c0, %c0_0] : memref<2x128xf32, #tpu.memory_space<vmem>>, vector<2x128xf32>
    %1 = vector.extract_strided_slice %0 {offsets = [0, 0], sizes = [1, 128], strides = [1, 1]} : vector<2x128xf32> to vector<1x128xf32>
    %2 = vector.extract_strided_slice %0 {offsets = [1, 0], sizes = [1, 128], strides = [1, 1]} : vector<2x128xf32> to vector<1x128xf32>
    %c0_1 = arith.constant 0 : index
    %c0_2 = arith.constant 0 : index
    %3 = vector.load %arg2[%c0_1, %c0_2] : memref<224x51xf32, #tpu.memory_space<vmem>>, vector<20x2xf32>
    %c0_3 = arith.constant 0 : index
    %c50 = arith.constant 50 : index
    %4 = vector.load %arg2[%c0_3, %c50] : memref<224x51xf32, #tpu.memory_space<vmem>>, vector<20x1xf32>
    %5 = vector.extract_strided_slice %3 {offsets = [0, 0], sizes = [20, 1], strides = [1, 1]} : vector<20x2xf32> to vector<20x1xf32>
    %6 = vector.broadcast %5 : vector<20x1xf32> to vector<20x128xf32>
    %7 = vector.broadcast %1 : vector<1x128xf32> to vector<20x128xf32>
    %8 = arith.mulf %6, %7 : vector<20x128xf32>
    %9 = vector.extract_strided_slice %3 {offsets = [0, 1], sizes = [20, 1], strides = [1, 1]} : vector<20x2xf32> to vector<20x1xf32>
    %10 = vector.broadcast %9 : vector<20x1xf32> to vector<20x128xf32>
    %11 = vector.broadcast %2 : vector<1x128xf32> to vector<20x128xf32>
    %12 = arith.mulf %10, %11 : vector<20x128xf32>
    %13 = arith.addf %8, %12 : vector<20x128xf32>
    %14 = vector.broadcast %4 : vector<20x1xf32> to vector<20x128xf32>
    %15 = arith.addf %13, %14 : vector<20x128xf32>
    %16 = math.tanh %15 : vector<20x128xf32>
    %c24 = arith.constant 24 : index
    %c0_4 = arith.constant 0 : index
    %17 = vector.load %arg2[%c24, %c0_4] : memref<224x51xf32, #tpu.memory_space<vmem>>, vector<50x20xf32>
    %c24_5 = arith.constant 24 : index
    %c50_6 = arith.constant 50 : index
    %18 = vector.load %arg2[%c24_5, %c50_6] : memref<224x51xf32, #tpu.memory_space<vmem>>, vector<50x1xf32>
    %cst = arith.constant dense<0.000000e+00> : vector<50x128xf32>
    %19 = tpu.matmul %17, %16, %cst {dimension_numbers = #tpu.dot_dimension_numbers<[1], [0], [0], [1], [0, 0, 1, 1], [], []>} : vector<50x20xf32>, vector<20x128xf32>, vector<50x128xf32> -> vector<50x128xf32>
    %20 = vector.broadcast %18 : vector<50x1xf32> to vector<50x128xf32>
    %21 = arith.addf %19, %20 : vector<50x128xf32>
    %22 = math.tanh %21 : vector<50x128xf32>
    %c80 = arith.constant 80 : index
    %c0_7 = arith.constant 0 : index
    %23 = vector.load %arg2[%c80, %c0_7] : memref<224x51xf32, #tpu.memory_space<vmem>>, vector<50x50xf32>
    %c80_8 = arith.constant 80 : index
    %c50_9 = arith.constant 50 : index
    %24 = vector.load %arg2[%c80_8, %c50_9] : memref<224x51xf32, #tpu.memory_space<vmem>>, vector<50x1xf32>
    %cst_10 = arith.constant dense<0.000000e+00> : vector<50x128xf32>
    %25 = tpu.matmul %23, %22, %cst_10 {dimension_numbers = #tpu.dot_dimension_numbers<[1], [0], [0], [1], [0, 0, 1, 1], [], []>} : vector<50x50xf32>, vector<50x128xf32>, vector<50x128xf32> -> vector<50x128xf32>
    %26 = vector.broadcast %24 : vector<50x1xf32> to vector<50x128xf32>
    %27 = arith.addf %25, %26 : vector<50x128xf32>
    %28 = math.tanh %27 : vector<50x128xf32>
    %c136 = arith.constant 136 : index
    %c0_11 = arith.constant 0 : index
    %29 = vector.load %arg2[%c136, %c0_11] : memref<224x51xf32, #tpu.memory_space<vmem>>, vector<50x50xf32>
    %c136_12 = arith.constant 136 : index
    %c50_13 = arith.constant 50 : index
    %30 = vector.load %arg2[%c136_12, %c50_13] : memref<224x51xf32, #tpu.memory_space<vmem>>, vector<50x1xf32>
    %cst_14 = arith.constant dense<0.000000e+00> : vector<50x128xf32>
    %31 = tpu.matmul %29, %28, %cst_14 {dimension_numbers = #tpu.dot_dimension_numbers<[1], [0], [0], [1], [0, 0, 1, 1], [], []>} : vector<50x50xf32>, vector<50x128xf32>, vector<50x128xf32> -> vector<50x128xf32>
    %32 = vector.broadcast %30 : vector<50x1xf32> to vector<50x128xf32>
    %33 = arith.addf %31, %32 : vector<50x128xf32>
    %34 = math.tanh %33 : vector<50x128xf32>
    %c192 = arith.constant 192 : index
    %c0_15 = arith.constant 0 : index
    %35 = vector.load %arg2[%c192, %c0_15] : memref<224x51xf32, #tpu.memory_space<vmem>>, vector<20x50xf32>
    %c192_16 = arith.constant 192 : index
    %c50_17 = arith.constant 50 : index
    %36 = vector.load %arg2[%c192_16, %c50_17] : memref<224x51xf32, #tpu.memory_space<vmem>>, vector<20x1xf32>
    %cst_18 = arith.constant dense<0.000000e+00> : vector<20x128xf32>
    %37 = tpu.matmul %35, %34, %cst_18 {dimension_numbers = #tpu.dot_dimension_numbers<[1], [0], [0], [1], [0, 0, 1, 1], [], []>} : vector<20x50xf32>, vector<50x128xf32>, vector<20x128xf32> -> vector<20x128xf32>
    %38 = vector.broadcast %36 : vector<20x1xf32> to vector<20x128xf32>
    %39 = arith.addf %37, %38 : vector<20x128xf32>
    %40 = math.tanh %39 : vector<20x128xf32>
    %c216 = arith.constant 216 : index
    %c0_19 = arith.constant 0 : index
    %41 = vector.load %arg2[%c216, %c0_19] : memref<224x51xf32, #tpu.memory_space<vmem>>, vector<1x20xf32>
    %c216_20 = arith.constant 216 : index
    %c50_21 = arith.constant 50 : index
    %42 = vector.load %arg2[%c216_20, %c50_21] : memref<224x51xf32, #tpu.memory_space<vmem>>, vector<1x1xf32>
    %cst_22 = arith.constant dense<0.000000e+00> : vector<1x128xf32>
    %43 = tpu.matmul %41, %40, %cst_22 {dimension_numbers = #tpu.dot_dimension_numbers<[1], [0], [0], [1], [0, 0, 1, 1], [], []>} : vector<1x20xf32>, vector<20x128xf32>, vector<1x128xf32> -> vector<1x128xf32>
    %44 = vector.broadcast %42 : vector<1x1xf32> to vector<1x128xf32>
    %45 = arith.addf %43, %44 : vector<1x128xf32>
    %c0_23 = arith.constant 0 : index
    %c0_24 = arith.constant 0 : index
    %46 = vector.load %arg3[%c0_23, %c0_24] : memref<1x128xf32, #tpu.memory_space<vmem>>, vector<1x128xf32>
    tpu.vector_store %arg3[%c0_23, %c0_24], %45 {strides = array<i32>} : memref<1x128xf32, #tpu.memory_space<vmem>>, vector<1x128xf32>,
    return
  }
  func.func @transform_0(%arg0: i32) -> (i32, i32) {
    %c0_i32 = arith.constant 0 : i32
    %c0_i32_0 = arith.constant 0 : i32
    return %c0_i32, %arg0 : i32, i32
  }
  func.func @transform_1(%arg0: i32) -> (i32, i32) {
    %c0_i32 = arith.constant 0 : i32
    %c0_i32_0 = arith.constant 0 : i32
    %c0_i32_1 = arith.constant 0 : i32
    return %c0_i32, %c0_i32_0 : i32, i32
  }
  func.func @transform_2(%arg0: i32) -> (i32, i32) {
    %c0_i32 = arith.constant 0 : i32
    %c0_i32_0 = arith.constant 0 : i32
    return %c0_i32, %arg0 : i32, i32
  }
}

</mosaic_0001>

<llo_original>
// kernel: tpu_custom_call.1
$region0: #{tpu_custom_call.1}
  #allocation0 [shape = 'u32[]', space=smem, size = 0x4, offset = 0x4, fixed_abs, tag = 'smem constant byte address 0x4 - core index']
  #allocation1 [shape = 'u32[144,128]{1,0:T(1,128)}', space=vmem, size = 0x12000, scoped, tag = 'internal scratch']
  %s0 = inlined_call_operand.vmem [shape: f32[2,256], index: 0, kind: input, shape index: {}]
  %s1 = inlined_call_operand.vmem [shape: f32[224,51], index: 1, kind: input, shape index: {}]
  %s2 = inlined_call_operand.hbm [shape: f32[1,256], index: 2, kind: output, shape index: {}]
  %s3 = sld [smem:[#allocation0]]
  $region41: #{tpu_custom_call.1} parent=0
    _
  %s5 = ssub.s32 1, %s3
  %s6 = scalar_select 0, %s5, %s3
  $region1: #{tpu_custom_call.1} parent=0
    #allocation2 [shape = 'u8[1024]{0}', space=vmem, size = 0x400, scoped, tag = 'output window, operand 0']
    #allocation3 [shape = 's32[2]{0}', space=sflag, size = 0x8, scoped, tag = 'scoped memory for tpu_custom_call.1']
    %7 = vsyncpa [#allocation3], 0
    %s8 = scalar_lea.sflag [#allocation3], 1
    %9 = vsyncpa %s8, 0
    loop: start=0, step=1, limit=4
    $region2: #{tpu_custom_call.1} parent=1 // loop_pre_header
      _
    $region3: #{tpu_custom_call.1} parent=1 // loop_header
      %s11 = sphi 0, %s15
      %p12 = scmp.ge.s32.totalorder %s11, 4
      %s21 = sphi 0, %s23
      %s24 = sphi 0, %s21
      %s25 = sphi 0, %s24
      %s41 = sphi 0, %s25
      %s45 = sphi 0, %s45
      %s47 = sphi 0, %s45
      %s48 = sphi 0, %s47
      %s62 = sphi 0, %s48
      %s68 = sphi 0, %s70
      %s71 = sphi 0, %s68
      %s72 = sphi 0, %s71
      %s88 = sphi 0, %s72
    $region4: #{tpu_custom_call.1} parent=1 // loop_header_branch
      %14 = sbr.rel (%p12) target = $region8
    $region5: #{tpu_custom_call.1} parent=1 // loop_body
      %s16 = ssub.s32 %s11, 1
      %s17 = ssub.s32 %s11, 2
      %s18 = sadd.s32 %s11, 1
      %s19 = ssub.s32 %s11, %s18
      %p20 = scmp.eq.s32.totalorder %s19, 0
      %s22 = sadd.s32 %s21, 1
      %s23 = scalar_select %p20, %s21, %s22
      %p26 = pneg %p20
      %p27 = scmp.eq.s32.totalorder %s11, 1
      %p28 = por %p26, %p27
      %p29 = scmp.ne.s32.totalorder %s21, %s24
      %p30 = scmp.eq.s32.totalorder %s11, 0
      %p31 = por %p29, %p30
      %p32 = scmp.ne.s32.totalorder %s21, %s24
      %p33 = scmp.eq.s32.totalorder %s16, 1
      %p34 = por %p32, %p33
      %p35 = scmp.ne.s32.totalorder %s24, %s25
      %p36 = scmp.eq.s32.totalorder %s16, 0
      %p37 = por %p35, %p36
      %p38 = scmp.ne.s32.totalorder %s24, %s25
      %p39 = scmp.eq.s32.totalorder %s17, 1
      %p40 = por %p38, %p39
      %p42 = scmp.ne.s32.totalorder %s25, %s41
      %p43 = scmp.eq.s32.totalorder %s17, 0
      %p44 = por %p42, %p43
      %s46 = sadd.s32 %s45, 1
      %p49 = scmp.eq.s32.totalorder %s11, 1
      %p50 = scmp.ne.s32.totalorder %s45, %s47
      %p51 = scmp.eq.s32.totalorder %s11, 0
      %p52 = por %p50, %p51
      %p53 = scmp.ne.s32.totalorder %s45, %s47
      %p54 = scmp.eq.s32.totalorder %s16, 1
      %p55 = por %p53, %p54
      %p56 = scmp.ne.s32.totalorder %s47, %s48
      %p57 = scmp.eq.s32.totalorder %s16, 0
      %p58 = por %p56, %p57
      %p59 = scmp.ne.s32.totalorder %s47, %s48
      %p60 = scmp.eq.s32.totalorder %s17, 1
      %p61 = por %p59, %p60
      %p63 = scmp.ne.s32.totalorder %s48, %s62
      %p64 = scmp.eq.s32.totalorder %s17, 0
      %p65 = por %p63, %p64
      %s66 = ssub.s32 %s11, %s18
      %p67 = scmp.eq.s32.totalorder %s66, 0
      %s69 = sadd.s32 %s68, 1
      %s70 = scalar_select %p67, %s68, %s69
      %p73 = pneg %p67
      %p74 = scmp.eq.s32.totalorder %s11, 1
      %p75 = por %p73, %p74
      %p76 = scmp.ne.s32.totalorder %s68, %s71
      %p77 = scmp.eq.s32.totalorder %s11, 0
      %p78 = por %p76, %p77
      %p79 = scmp.ne.s32.totalorder %s68, %s71
      %p80 = scmp.eq.s32.totalorder %s16, 1
      %p81 = por %p79, %p80
      %p82 = scmp.ne.s32.totalorder %s71, %s72
      %p83 = scmp.eq.s32.totalorder %s16, 0
      %p84 = por %p82, %p83
      %p85 = scmp.ne.s32.totalorder %s71, %s72
      %p86 = scmp.eq.s32.totalorder %s17, 1
      %p87 = por %p85, %p86
      %p89 = scmp.ne.s32.totalorder %s72, %s88
      %p90 = scmp.eq.s32.totalorder %s17, 0
      %p91 = por %p89, %p90
      %p92 = scmp.le.s32.totalorder 1, %s11
      %p93 = scmp.lt.s32.totalorder %s11, 3
      %p94 = pnand %p92, %p93
      %p95 = pneg %p94
      // Predicated region
      $region9: #{tpu_custom_call.1} parent=5 // pred_check
        _
      $region10: #{tpu_custom_call.1} parent=5 // pred_check_branch
        %97 = sbr.rel (%p94) target = $region12
      $region11: #{tpu_custom_call.1} parent=5 // pred_region
        %s98 = ssub.s32 %s11, 1
        // Predicated region
        $region13: #{tpu_custom_call.1} parent=11 // pred_check
          %p99 = pneg %p58
        $region14: #{tpu_custom_call.1} parent=11 // pred_check_branch
          %101 = sbr.rel (%p99) target = $region16
        $region15: #{tpu_custom_call.1} parent=11 // pred_region
          _
        $region16: #{tpu_custom_call.1} parent=11 // pred_fallthru
          _
      $region12: #{tpu_custom_call.1} parent=5 // pred_fallthru
        _
      %p102 = scmp.lt.s32.totalorder %s11, 2
      // Predicated region
      $region17: #{tpu_custom_call.1} parent=5 // pred_check
        %p103 = pneg %p102
      $region18: #{tpu_custom_call.1} parent=5 // pred_check_branch
        %105 = sbr.rel (%p103) target = $region20
      $region19: #{tpu_custom_call.1} parent=5 // pred_region
        // Predicated region
        $region21: #{tpu_custom_call.1} parent=19 // pred_check
          %p106 = pneg %p31
        $region22: #{tpu_custom_call.1} parent=19 // pred_check_branch
          %108 = sbr.rel (%p106) target = $region24
        $region23: #{tpu_custom_call.1} parent=19 // pred_region
          %p109 = scmp.lt.s32.totalorder %s11, 1
          %s110 = scalar_select %p109, %s11, 1
          %s111 = smul.addr %s110, 2
          %s112 = scalar_lea.vmem %s0, %s111
        $region24: #{tpu_custom_call.1} parent=19 // pred_fallthru
          _
      $region20: #{tpu_custom_call.1} parent=5 // pred_fallthru
        _
      %p113 = scmp.le.s32.totalorder 1, %s11
      %p114 = scmp.lt.s32.totalorder %s11, 3
      %p115 = pnand %p113, %p114
      %p116 = pneg %p115
      // Predicated region
      $region25: #{tpu_custom_call.1} parent=5 // pred_check
        _
      $region26: #{tpu_custom_call.1} parent=5 // pred_check_branch
        %118 = sbr.rel (%p115) target = $region28
      $region27: #{tpu_custom_call.1} parent=5 // pred_region
        %s119 = ssub.s32 %s11, 1
        %p120 = scmp.lt.s32.totalorder %s16, 1
        %s121 = scalar_select %p120, %s16, 1
        %s122 = smul.addr %s121, 2
        %s123 = scalar_lea.vmem %s0, %s122
        %p124 = pneg %p37
        %p125 = pneg %p34
        %p126 = pneg %p58
        %p127 = pneg %p55
        %p128 = pneg %p84
        %p129 = pneg %p81
        %s130 = sand.u32 %s71, 1
        %s131 = scalar_lea.sflag [#allocation3], %s130
        %s132 = sand.u32 %s71, 1
        %s133 = scalar_lea.vmem [#allocation2], %s132
        %p134 = scmp.lt.s32.totalorder %s16, 1
        %s135 = scalar_select %p134, %s16, 1
        %s136 = smul.addr %s135, 2
        %s137 = scalar_lea.vmem %s0, %s136
        %v138 = vld [vmem:[%s137] sm:$0x3]
        %v139 = vld [vmem:[%s1] sm:$0xff]
        %v140 = vld [vmem:[%s1 + $0x8] sm:$0xff]
        %v141 = vld [vmem:[%s1 + $0x10] sm:$0xf]
        %143 = vset.pattern.permute.xlu0 0
        %144 = vperm.xlu0 %143, %v139
        %v145 = vpop.permute.xlu0 %144
        %148 = vset.pattern.permute.xlu0 0
        %149 = vperm.xlu0 %148, %v140
        %v150 = vpop.permute.xlu0 %149
        %153 = vset.pattern.permute.xlu0 0
        %154 = vperm.xlu0 %153, %v141
        %v155 = vpop.permute.xlu0 %154
        %v157 = vlaneseq
        %v158 = vshrl.u32 %v157, 7
        %v159 = vsub.s32 0, %v158
        %v160 = vrot.slane %v138, %v159
        %v161 = vmul.f32 %v145, %v160
        %v162 = vmul.f32 %v150, %v160
        %v163 = vmul.f32 %v155, %v160
        %164 = vset.pattern.permute.xlu0 1
        %165 = vperm.xlu0 %164, %v139
        %v166 = vpop.permute.xlu0 %165
        %168 = vset.pattern.permute.xlu0 1
        %169 = vperm.xlu0 %168, %v140
        %v170 = vpop.permute.xlu0 %169
        %172 = vset.pattern.permute.xlu0 1
        %173 = vperm.xlu0 %172, %v141
        %v174 = vpop.permute.xlu0 %173
        %v176 = vlaneseq
        %v177 = vshrl.u32 %v176, 7
        %v178 = vsub.s32 1, %v177
        %v179 = vrot.slane %v138, %v178
        %v180 = vmul.f32 %v166, %v179
        %v181 = vmul.f32 %v170, %v179
        %v182 = vmul.f32 %v174, %v179
        %v183 = vadd.f32 %v161, %v180
        %v184 = vadd.f32 %v162, %v181
        %v185 = vadd.f32 %v163, %v182
        %186 = vset.pattern.permute.xlu0 50
        %187 = vperm.xlu0 %186, %v139
        %v188 = vpop.permute.xlu0 %187
        %190 = vset.pattern.permute.xlu0 50
        %191 = vperm.xlu0 %190, %v140
        %v192 = vpop.permute.xlu0 %191
        %194 = vset.pattern.permute.xlu0 50
        %195 = vperm.xlu0 %194, %v141
        %v196 = vpop.permute.xlu0 %195
        %v198 = vadd.f32 %v183, %v188
        %v199 = vadd.f32 %v184, %v192
        %v200 = vadd.f32 %v185, %v196
        %v201 = vtanh.pop %v198
        %v202 = vtanh.pop %v199
        %v203 = vtanh.pop %v200
        %v204 = vld [vmem:[%s1 + $0x18] sm:$0xff]
        %v205 = vld [vmem:[%s1 + $0x20] sm:$0xff]
        %v206 = vld [vmem:[%s1 + $0x28] sm:$0xff]
        %v207 = vld [vmem:[%s1 + $0x30] sm:$0xff]
        %v208 = vld [vmem:[%s1 + $0x38] sm:$0xff]
        %v209 = vld [vmem:[%s1 + $0x40] sm:$0xff]
        %v210 = vld [vmem:[%s1 + $0x48] sm:$0x3]
        %212 = vset.pattern.permute.xlu0 50
        %213 = vperm.xlu0 %212, %v204
        %v214 = vpop.permute.xlu0 %213
        %217 = vset.pattern.permute.xlu0 50
        %218 = vperm.xlu0 %217, %v205
        %v219 = vpop.permute.xlu0 %218
        %222 = vset.pattern.permute.xlu0 50
        %223 = vperm.xlu0 %222, %v206
        %v224 = vpop.permute.xlu0 %223
        %227 = vset.pattern.permute.xlu0 50
        %228 = vperm.xlu0 %227, %v207
        %v229 = vpop.permute.xlu0 %228
        %232 = vset.pattern.permute.xlu0 50
        %233 = vperm.xlu0 %232, %v208
        %v234 = vpop.permute.xlu0 %233
        %237 = vset.pattern.permute.xlu0 50
        %238 = vperm.xlu0 %237, %v209
        %v239 = vpop.permute.xlu0 %238
        %242 = vset.pattern.permute.xlu0 50
        %243 = vperm.xlu0 %242, %v210
        %v244 = vpop.permute.xlu0 %243
        %vm246 = vcmask 162816
        %v247 = vsel %vm246, %v204, 0
        %v249 = vsel %vm246, %v205, 0
        %v251 = vsel %vm246, %v206, 0
        %v253 = vsel %vm246, %v207, 0
        %v255 = vsel %vm246, %v208, 0
        %v257 = vsel %vm246, %v209, 0
        %v259 = vsel %vm246, %v210, 0
        %vm261 = vcmask 1043456
        %v263 = vsel %vm261, %v203, 0
        %265 = vmatprep.subr.mxu0 0.0
        %266 = vmatpush1.msra.mxu0 %v201
        %267 = vmatprep.subr.mxu0 0.0
        %268 = vmatpush1.msra.mxu0 %v202
        %269 = vmatprep.subr.mxu0 0.0
        %270 = vmatpush1.msra.mxu0 %v263
        %271 = vmatprep.subr.mxu0 0.0
        %272 = vmatpush1.msra.mxu0 0.0
        %273 = vmatprep.subr.mxu0 0.0
        %274 = vmatpush1.msra.mxu0 0.0
        %275 = vmatprep.subr.mxu0 0.0
        %276 = vmatpush1.msra.mxu0 0.0
        %277 = vmatprep.subr.mxu0 0.0
        %278 = vmatpush1.msra.mxu0 0.0
        %279 = vmatprep.subr.mxu0 0.0
        %280 = vmatpush1.msra.mxu0 0.0
        %281 = vmatprep.subr.mxu0 0.0
        %282 = vmatpush1.msra.mxu0 0.0
        %283 = vmatprep.subr.mxu0 0.0
        %284 = vmatpush1.msra.mxu0 0.0
        %285 = vmatprep.subr.mxu0 0.0
        %286 = vmatpush1.msra.mxu0 0.0
        %287 = vmatprep.subr.mxu0 0.0
        %288 = vmatpush1.msra.mxu0 0.0
        %289 = vmatprep.subr.mxu0 0.0
        %290 = vmatpush1.msra.mxu0 0.0
        %291 = vmatprep.subr.mxu0 0.0
        %292 = vmatpush1.msra.mxu0 0.0
        %293 = vmatprep.subr.mxu0 0.0
        %294 = vmatpush1.msra.mxu0 0.0
        %295 = vmatprep.subr.mxu0 0.0
        %296 = vmatpush1.msra.mxu0 0.0
        %297 = vmatprep.subr.mxu0 0.0
        %298 = vmatpush1.msra.mxu0 0.0
        %299 = vmatprep.subr.mxu0 0.0
        %300 = vmatpush1.msra.mxu0 0.0
        %301 = vmatprep.subr.mxu0 0.0
        %302 = vmatpush1.msra.mxu0 0.0
        %303 = vmatprep.subr.mxu0 0.0
        %304 = vmatpush1.msra.mxu0 0.0
        %305 = vmatprep.subr.mxu0 0.0
        %306 = vmatpush1.msra.mxu0 0.0
        %307 = vmatprep.subr.mxu0 0.0
        %308 = vmatpush1.msra.mxu0 0.0
        %309 = vmatprep.subr.mxu0 0.0
        %310 = vmatpush1.msra.mxu0 0.0
        %311 = vmatprep.subr.mxu0 0.0
        %312 = vmatpush1.msra.mxu0 0.0
        %313 = vmatprep.subr.mxu0 0.0
        %314 = vmatpush1.msra.mxu0 0.0
        %315 = vmatprep.subr.mxu0 0.0
        %316 = vmatpush1.msra.mxu0 0.0
        %317 = vmatprep.subr.mxu0 0.0
        %318 = vmatpush1.msra.mxu0 0.0
        %319 = vmatprep.subr.mxu0 0.0
        %320 = vmatpush1.msra.mxu0 0.0
        %321 = vmatprep.subr.mxu0 0.0
        %322 = vmatpush1.msra.mxu0 0.0
        %323 = vmatprep.subr.mxu0 0.0
        %324 = vmatpush1.msra.mxu0 0.0
        %325 = vmatprep.subr.mxu0 0.0
        %326 = vmatpush1.msra.mxu0 0.0
        %327 = vmatprep.subr.mxu0 0.0
        %328 = vmatpush1.msra.mxu0 0.0
        %329 = vmatprep.mubr.f32.mxu0 0.0
        %330 = vmatmul.mubr.f32.gmra.mrb[0].mxu0 %v247
        %v331 = vpop.f32.mrb[0].mxu0
        %v332 = vadd.f32 %v214, %v331
        %v333 = vpop.f32.mrb[0].mxu0
        %334 = vmatprep.mubr.f32.mxu0 0.0
        %335 = vmatmul.mubr.f32.gmra.mrb[0].mxu0 %v249
        %v336 = vpop.f32.mrb[0].mxu0
        %v337 = vadd.f32 %v219, %v336
        %v338 = vpop.f32.mrb[0].mxu0
        %339 = vmatprep.mubr.f32.mxu0 0.0
        %340 = vmatmul.mubr.f32.gmra.mrb[0].mxu0 %v251
        %v341 = vpop.f32.mrb[0].mxu0
        %v342 = vadd.f32 %v224, %v341
        %v343 = vpop.f32.mrb[0].mxu0
        %344 = vmatprep.mubr.f32.mxu0 0.0
        %345 = vmatmul.mubr.f32.gmra.mrb[0].mxu0 %v253
        %v346 = vpop.f32.mrb[0].mxu0
        %v347 = vadd.f32 %v229, %v346
        %v348 = vpop.f32.mrb[0].mxu0
        %349 = vmatprep.mubr.f32.mxu0 0.0
        %350 = vmatmul.mubr.f32.gmra.mrb[0].mxu0 %v255
        %v351 = vpop.f32.mrb[0].mxu0
        %v352 = vadd.f32 %v234, %v351
        %v353 = vpop.f32.mrb[0].mxu0
        %354 = vmatprep.mubr.f32.mxu0 0.0
        %355 = vmatmul.mubr.f32.gmra.mrb[0].mxu0 %v257
        %v356 = vpop.f32.mrb[0].mxu0
        %v357 = vadd.f32 %v239, %v356
        %v358 = vpop.f32.mrb[0].mxu0
        %359 = vmatprep.mubr.f32.mxu0 0.0
        %360 = vmatmul.mubr.f32.gmra.mrb[0].mxu0 %v259
        %v361 = vpop.f32.mrb[0].mxu0
        %v362 = vadd.f32 %v244, %v361
        %v363 = vpop.f32.mrb[0].mxu0
        %364 = vdwg.mxu0
        %v365 = vtanh.pop %v332
        %v366 = vtanh.pop %v337
        %v367 = vtanh.pop %v342
        %v368 = vtanh.pop %v347
        %v369 = vtanh.pop %v352
        %v370 = vtanh.pop %v357
        %v371 = vtanh.pop %v362
        %v372 = vld [vmem:[%s1 + $0x50] sm:$0xff]
        %v373 = vld [vmem:[%s1 + $0x58] sm:$0xff]
        %v374 = vld [vmem:[%s1 + $0x60] sm:$0xff]
        %v375 = vld [vmem:[%s1 + $0x68] sm:$0xff]
        %v376 = vld [vmem:[%s1 + $0x70] sm:$0xff]
        %v377 = vld [vmem:[%s1 + $0x78] sm:$0xff]
        %v378 = vld [vmem:[%s1 + $0x80] sm:$0x3]
        %380 = vset.pattern.permute.xlu0 50
        %381 = vperm.xlu0 %380, %v372
        %v382 = vpop.permute.xlu0 %381
        %385 = vset.pattern.permute.xlu0 50
        %386 = vperm.xlu0 %385, %v373
        %v387 = vpop.permute.xlu0 %386
        %390 = vset.pattern.permute.xlu0 50
        %391 = vperm.xlu0 %390, %v374
        %v392 = vpop.permute.xlu0 %391
        %395 = vset.pattern.permute.xlu0 50
        %396 = vperm.xlu0 %395, %v375
        %v397 = vpop.permute.xlu0 %396
        %400 = vset.pattern.permute.xlu0 50
        %401 = vperm.xlu0 %400, %v376
        %v402 = vpop.permute.xlu0 %401
        %405 = vset.pattern.permute.xlu0 50
        %406 = vperm.xlu0 %405, %v377
        %v407 = vpop.permute.xlu0 %406
        %410 = vset.pattern.permute.xlu0 50
        %411 = vperm.xlu0 %410, %v378
        %v412 = vpop.permute.xlu0 %411
        %vm414 = vcmask 408576
        %v415 = vsel %vm414, %v372, 0
        %v417 = vsel %vm414, %v373, 0
        %v419 = vsel %vm414, %v374, 0
        %v421 = vsel %vm414, %v375, 0
        %v423 = vsel %vm414, %v376, 0
        %v425 = vsel %vm414, %v377, 0
        %v427 = vsel %vm414, %v378, 0
        %vm429 = vcmask 1041408
        %v431 = vsel %vm429, %v371, 0
        %433 = vmatprep.subr.mxu0 0.0
        %434 = vmatpush1.msra.mxu0 %v365
        %435 = vmatprep.subr.mxu0 0.0
        %436 = vmatpush1.msra.mxu0 %v366
        %437 = vmatprep.subr.mxu0 0.0
        %438 = vmatpush1.msra.mxu0 %v367
        %439 = vmatprep.subr.mxu0 0.0
        %440 = vmatpush1.msra.mxu0 %v368
        %441 = vmatprep.subr.mxu0 0.0
        %442 = vmatpush1.msra.mxu0 %v369
        %443 = vmatprep.subr.mxu0 0.0
        %444 = vmatpush1.msra.mxu0 %v370
        %445 = vmatprep.subr.mxu0 0.0
        %446 = vmatpush1.msra.mxu0 %v431
        %447 = vmatprep.subr.mxu0 0.0
        %448 = vmatpush1.msra.mxu0 0.0
        %449 = vmatprep.subr.mxu0 0.0
        %450 = vmatpush1.msra.mxu0 0.0
        %451 = vmatprep.subr.mxu0 0.0
        %452 = vmatpush1.msra.mxu0 0.0
        %453 = vmatprep.subr.mxu0 0.0
        %454 = vmatpush1.msra.mxu0 0.0
        %455 = vmatprep.subr.mxu0 0.0
        %456 = vmatpush1.msra.mxu0 0.0
        %457 = vmatprep.subr.mxu0 0.0
        %458 = vmatpush1.msra.mxu0 0.0
        %459 = vmatprep.subr.mxu0 0.0
        %460 = vmatpush1.msra.mxu0 0.0
        %461 = vmatprep.subr.mxu0 0.0
        %462 = vmatpush1.msra.mxu0 0.0
        %463 = vmatprep.subr.mxu0 0.0
        %464 = vmatpush1.msra.mxu0 0.0
        %465 = vmatprep.subr.mxu0 0.0
        %466 = vmatpush1.msra.mxu0 0.0
        %467 = vmatprep.subr.mxu0 0.0
        %468 = vmatpush1.msra.mxu0 0.0
        %469 = vmatprep.subr.mxu0 0.0
        %470 = vmatpush1.msra.mxu0 0.0
        %471 = vmatprep.subr.mxu0 0.0
        %472 = vmatpush1.msra.mxu0 0.0
        %473 = vmatprep.subr.mxu0 0.0
        %474 = vmatpush1.msra.mxu0 0.0
        %475 = vmatprep.subr.mxu0 0.0
        %476 = vmatpush1.msra.mxu0 0.0
        %477 = vmatprep.subr.mxu0 0.0
        %478 = vmatpush1.msra.mxu0 0.0
        %479 = vmatprep.subr.mxu0 0.0
        %480 = vmatpush1.msra.mxu0 0.0
        %481 = vmatprep.subr.mxu0 0.0
        %482 = vmatpush1.msra.mxu0 0.0
        %483 = vmatprep.subr.mxu0 0.0
        %484 = vmatpush1.msra.mxu0 0.0
        %485 = vmatprep.subr.mxu0 0.0
        %486 = vmatpush1.msra.mxu0 0.0
        %487 = vmatprep.subr.mxu0 0.0
        %488 = vmatpush1.msra.mxu0 0.0
        %489 = vmatprep.subr.mxu0 0.0
        %490 = vmatpush1.msra.mxu0 0.0
        %491 = vmatprep.subr.mxu0 0.0
        %492 = vmatpush1.msra.mxu0 0.0
        %493 = vmatprep.subr.mxu0 0.0
        %494 = vmatpush1.msra.mxu0 0.0
        %495 = vmatprep.subr.mxu0 0.0
        %496 = vmatpush1.msra.mxu0 0.0
        %497 = vmatprep.mubr.f32.mxu0 0.0
        %498 = vmatmul.mubr.f32.gmra.mrb[0].mxu0 %v415
        %v499 = vpop.f32.mrb[0].mxu0
        %v500 = vadd.f32 %v382, %v499
        %v501 = vpop.f32.mrb[0].mxu0
        %502 = vmatprep.mubr.f32.mxu0 0.0
        %503 = vmatmul.mubr.f32.gmra.mrb[0].mxu0 %v417
        %v504 = vpop.f32.mrb[0].mxu0
        %v505 = vadd.f32 %v387, %v504
        %v506 = vpop.f32.mrb[0].mxu0
        %507 = vmatprep.mubr.f32.mxu0 0.0
        %508 = vmatmul.mubr.f32.gmra.mrb[0].mxu0 %v419
        %v509 = vpop.f32.mrb[0].mxu0
        %v510 = vadd.f32 %v392, %v509
        %v511 = vpop.f32.mrb[0].mxu0
        %512 = vmatprep.mubr.f32.mxu0 0.0
        %513 = vmatmul.mubr.f32.gmra.mrb[0].mxu0 %v421
        %v514 = vpop.f32.mrb[0].mxu0
        %v515 = vadd.f32 %v397, %v514
        %v516 = vpop.f32.mrb[0].mxu0
        %517 = vmatprep.mubr.f32.mxu0 0.0
        %518 = vmatmul.mubr.f32.gmra.mrb[0].mxu0 %v423
        %v519 = vpop.f32.mrb[0].mxu0
        %v520 = vadd.f32 %v402, %v519
        %v521 = vpop.f32.mrb[0].mxu0
        %522 = vmatprep.mubr.f32.mxu0 0.0
        %523 = vmatmul.mubr.f32.gmra.mrb[0].mxu0 %v425
        %v524 = vpop.f32.mrb[0].mxu0
        %v525 = vadd.f32 %v407, %v524
        %v526 = vpop.f32.mrb[0].mxu0
        %527 = vmatprep.mubr.f32.mxu0 0.0
        %528 = vmatmul.mubr.f32.gmra.mrb[0].mxu0 %v427
        %v529 = vpop.f32.mrb[0].mxu0
        %v530 = vadd.f32 %v412, %v529
        %v531 = vpop.f32.mrb[0].mxu0
        %532 = vdwg.mxu0
        %v533 = vtanh.pop %v500
        %v534 = vtanh.pop %v505
        %v535 = vtanh.pop %v510
        %v536 = vtanh.pop %v515
        %v537 = vtanh.pop %v520
        %v538 = vtanh.pop %v525
        %v539 = vtanh.pop %v530
        %v540 = vld [vmem:[%s1 + $0x88] sm:$0xff]
        %v541 = vld [vmem:[%s1 + $0x90] sm:$0xff]
        %v542 = vld [vmem:[%s1 + $0x98] sm:$0xff]
        %v543 = vld [vmem:[%s1 + $0xa0] sm:$0xff]
        %v544 = vld [vmem:[%s1 + $0xa8] sm:$0xff]
        %v545 = vld [vmem:[%s1 + $0xb0] sm:$0xff]
        %v546 = vld [vmem:[%s1 + $0xb8] sm:$0x3]
        %548 = vset.pattern.permute.xlu0 50
        %549 = vperm.xlu0 %548, %v540
        %v550 = vpop.permute.xlu0 %549
        %553 = vset.pattern.permute.xlu0 50
        %554 = vperm.xlu0 %553, %v541
        %v555 = vpop.permute.xlu0 %554
        %558 = vset.pattern.permute.xlu0 50
        %559 = vperm.xlu0 %558, %v542
        %v560 = vpop.permute.xlu0 %559
        %563 = vset.pattern.permute.xlu0 50
        %564 = vperm.xlu0 %563, %v543
        %v565 = vpop.permute.xlu0 %564
        %568 = vset.pattern.permute.xlu0 50
        %569 = vperm.xlu0 %568, %v544
        %v570 = vpop.permute.xlu0 %569
        %573 = vset.pattern.permute.xlu0 50
        %574 = vperm.xlu0 %573, %v545
        %v575 = vpop.permute.xlu0 %574
        %578 = vset.pattern.permute.xlu0 50
        %579 = vperm.xlu0 %578, %v546
        %v580 = vpop.permute.xlu0 %579
        %v582 = vsel %vm414, %v540, 0
        %v584 = vsel %vm414, %v541, 0
        %v586 = vsel %vm414, %v542, 0
        %v588 = vsel %vm414, %v543, 0
        %v590 = vsel %vm414, %v544, 0
        %v592 = vsel %vm414, %v545, 0
        %v594 = vsel %vm414, %v546, 0
        %v597 = vsel %vm429, %v539, 0
        %599 = vmatprep.subr.mxu0 0.0
        %600 = vmatpush1.msra.mxu0 %v533
        %601 = vmatprep.subr.mxu0 0.0
        %602 = vmatpush1.msra.mxu0 %v534
        %603 = vmatprep.subr.mxu0 0.0
        %604 = vmatpush1.msra.mxu0 %v535
        %605 = vmatprep.subr.mxu0 0.0
        %606 = vmatpush1.msra.mxu0 %v536
        %607 = vmatprep.subr.mxu0 0.0
        %608 = vmatpush1.msra.mxu0 %v537
        %609 = vmatprep.subr.mxu0 0.0
        %610 = vmatpush1.msra.mxu0 %v538
        %611 = vmatprep.subr.mxu0 0.0
        %612 = vmatpush1.msra.mxu0 %v597
        %613 = vmatprep.subr.mxu0 0.0
        %614 = vmatpush1.msra.mxu0 0.0
        %615 = vmatprep.subr.mxu0 0.0
        %616 = vmatpush1.msra.mxu0 0.0
        %617 = vmatprep.subr.mxu0 0.0
        %618 = vmatpush1.msra.mxu0 0.0
        %619 = vmatprep.subr.mxu0 0.0
        %620 = vmatpush1.msra.mxu0 0.0
        %621 = vmatprep.subr.mxu0 0.0
        %622 = vmatpush1.msra.mxu0 0.0
        %623 = vmatprep.subr.mxu0 0.0
        %624 = vmatpush1.msra.mxu0 0.0
        %625 = vmatprep.subr.mxu0 0.0
        %626 = vmatpush1.msra.mxu0 0.0
        %627 = vmatprep.subr.mxu0 0.0
        %628 = vmatpush1.msra.mxu0 0.0
        %629 = vmatprep.subr.mxu0 0.0
        %630 = vmatpush1.msra.mxu0 0.0
        %631 = vmatprep.subr.mxu0 0.0
        %632 = vmatpush1.msra.mxu0 0.0
        %633 = vmatprep.subr.mxu0 0.0
        %634 = vmatpush1.msra.mxu0 0.0
        %635 = vmatprep.subr.mxu0 0.0
        %636 = vmatpush1.msra.mxu0 0.0
        %637 = vmatprep.subr.mxu0 0.0
        %638 = vmatpush1.msra.mxu0 0.0
        %639 = vmatprep.subr.mxu0 0.0
        %640 = vmatpush1.msra.mxu0 0.0
        %641 = vmatprep.subr.mxu0 0.0
        %642 = vmatpush1.msra.mxu0 0.0
        %643 = vmatprep.subr.mxu0 0.0
        %644 = vmatpush1.msra.mxu0 0.0
        %645 = vmatprep.subr.mxu0 0.0
        %646 = vmatpush1.msra.mxu0 0.0
        %647 = vmatprep.subr.mxu0 0.0
        %648 = vmatpush1.msra.mxu0 0.0
        %649 = vmatprep.subr.mxu0 0.0
        %650 = vmatpush1.msra.mxu0 0.0
        %651 = vmatprep.subr.mxu0 0.0
        %652 = vmatpush1.msra.mxu0 0.0
        %653 = vmatprep.subr.mxu0 0.0
        %654 = vmatpush1.msra.mxu0 0.0
        %655 = vmatprep.subr.mxu0 0.0
        %656 = vmatpush1.msra.mxu0 0.0
        %657 = vmatprep.subr.mxu0 0.0
        %658 = vmatpush1.msra.mxu0 0.0
        %659 = vmatprep.subr.mxu0 0.0
        %660 = vmatpush1.msra.mxu0 0.0
        %661 = vmatprep.subr.mxu0 0.0
        %662 = vmatpush1.msra.mxu0 0.0
        %663 = vmatprep.mubr.f32.mxu0 0.0
        %664 = vmatmul.mubr.f32.gmra.mrb[0].mxu0 %v582
        %v665 = vpop.f32.mrb[0].mxu0
        %v666 = vadd.f32 %v550, %v665
        %v667 = vpop.f32.mrb[0].mxu0
        %668 = vmatprep.mubr.f32.mxu0 0.0
        %669 = vmatmul.mubr.f32.gmra.mrb[0].mxu0 %v584
        %v670 = vpop.f32.mrb[0].mxu0
        %v671 = vadd.f32 %v555, %v670
        %v672 = vpop.f32.mrb[0].mxu0
        %673 = vmatprep.mubr.f32.mxu0 0.0
        %674 = vmatmul.mubr.f32.gmra.mrb[0].mxu0 %v586
        %v675 = vpop.f32.mrb[0].mxu0
        %v676 = vadd.f32 %v560, %v675
        %v677 = vpop.f32.mrb[0].mxu0
        %678 = vmatprep.mubr.f32.mxu0 0.0
        %679 = vmatmul.mubr.f32.gmra.mrb[0].mxu0 %v588
        %v680 = vpop.f32.mrb[0].mxu0
        %v681 = vadd.f32 %v565, %v680
        %v682 = vpop.f32.mrb[0].mxu0
        %683 = vmatprep.mubr.f32.mxu0 0.0
        %684 = vmatmul.mubr.f32.gmra.mrb[0].mxu0 %v590
        %v685 = vpop.f32.mrb[0].mxu0
        %v686 = vadd.f32 %v570, %v685
        %v687 = vpop.f32.mrb[0].mxu0
        %688 = vmatprep.mubr.f32.mxu0 0.0
        %689 = vmatmul.mubr.f32.gmra.mrb[0].mxu0 %v592
        %v690 = vpop.f32.mrb[0].mxu0
        %v691 = vadd.f32 %v575, %v690
        %v692 = vpop.f32.mrb[0].mxu0
        %693 = vmatprep.mubr.f32.mxu0 0.0
        %694 = vmatmul.mubr.f32.gmra.mrb[0].mxu0 %v594
        %v695 = vpop.f32.mrb[0].mxu0
        %v696 = vadd.f32 %v580, %v695
        %v697 = vpop.f32.mrb[0].mxu0
        %698 = vdwg.mxu0
        %v699 = vtanh.pop %v666
        %v700 = vtanh.pop %v671
        %v701 = vtanh.pop %v676
        %v702 = vtanh.pop %v681
        %v703 = vtanh.pop %v686
        %v704 = vtanh.pop %v691
        %v705 = vtanh.pop %v696
        %v706 = vld [vmem:[%s1 + $0xc0] sm:$0xff]
        %v707 = vld [vmem:[%s1 + $0xc8] sm:$0xff]
        %v708 = vld [vmem:[%s1 + $0xd0] sm:$0xf]
        %710 = vset.pattern.permute.xlu0 50
        %711 = vperm.xlu0 %710, %v706
        %v712 = vpop.permute.xlu0 %711
        %715 = vset.pattern.permute.xlu0 50
        %716 = vperm.xlu0 %715, %v707
        %v717 = vpop.permute.xlu0 %716
        %720 = vset.pattern.permute.xlu0 50
        %721 = vperm.xlu0 %720, %v708
        %v722 = vpop.permute.xlu0 %721
        %v724 = vsel %vm414, %v706, 0
        %v726 = vsel %vm414, %v707, 0
        %v728 = vsel %vm414, %v708, 0
        %v731 = vsel %vm429, %v705, 0
        %733 = vmatprep.subr.mxu0 0.0
        %734 = vmatpush1.msra.mxu0 %v699
        %735 = vmatprep.subr.mxu0 0.0
        %736 = vmatpush1.msra.mxu0 %v700
        %737 = vmatprep.subr.mxu0 0.0
        %738 = vmatpush1.msra.mxu0 %v701
        %739 = vmatprep.subr.mxu0 0.0
        %740 = vmatpush1.msra.mxu0 %v702
        %741 = vmatprep.subr.mxu0 0.0
        %742 = vmatpush1.msra.mxu0 %v703
        %743 = vmatprep.subr.mxu0 0.0
        %744 = vmatpush1.msra.mxu0 %v704
        %745 = vmatprep.subr.mxu0 0.0
        %746 = vmatpush1.msra.mxu0 %v731
        %747 = vmatprep.subr.mxu0 0.0
        %748 = vmatpush1.msra.mxu0 0.0
        %749 = vmatprep.subr.mxu0 0.0
        %750 = vmatpush1.msra.mxu0 0.0
        %751 = vmatprep.subr.mxu0 0.0
        %752 = vmatpush1.msra.mxu0 0.0
        %753 = vmatprep.subr.mxu0 0.0
        %754 = vmatpush1.msra.mxu0 0.0
        %755 = vmatprep.subr.mxu0 0.0
        %756 = vmatpush1.msra.mxu0 0.0
        %757 = vmatprep.subr.mxu0 0.0
        %758 = vmatpush1.msra.mxu0 0.0
        %759 = vmatprep.subr.mxu0 0.0
        %760 = vmatpush1.msra.mxu0 0.0
        %761 = vmatprep.subr.mxu0 0.0
        %762 = vmatpush1.msra.mxu0 0.0
        %763 = vmatprep.subr.mxu0 0.0
        %764 = vmatpush1.msra.mxu0 0.0
        %765 = vmatprep.subr.mxu0 0.0
        %766 = vmatpush1.msra.mxu0 0.0
        %767 = vmatprep.subr.mxu0 0.0
        %768 = vmatpush1.msra.mxu0 0.0
        %769 = vmatprep.subr.mxu0 0.0
        %770 = vmatpush1.msra.mxu0 0.0
        %771 = vmatprep.subr.mxu0 0.0
        %772 = vmatpush1.msra.mxu0 0.0
        %773 = vmatprep.subr.mxu0 0.0
        %774 = vmatpush1.msra.mxu0 0.0
        %775 = vmatprep.subr.mxu0 0.0
        %776 = vmatpush1.msra.mxu0 0.0
        %777 = vmatprep.subr.mxu0 0.0
        %778 = vmatpush1.msra.mxu0 0.0
        %779 = vmatprep.subr.mxu0 0.0
        %780 = vmatpush1.msra.mxu0 0.0
        %781 = vmatprep.subr.mxu0 0.0
        %782 = vmatpush1.msra.mxu0 0.0
        %783 = vmatprep.subr.mxu0 0.0
        %784 = vmatpush1.msra.mxu0 0.0
        %785 = vmatprep.subr.mxu0 0.0
        %786 = vmatpush1.msra.mxu0 0.0
        %787 = vmatprep.subr.mxu0 0.0
        %788 = vmatpush1.msra.mxu0 0.0
        %789 = vmatprep.subr.mxu0 0.0
        %790 = vmatpush1.msra.mxu0 0.0
        %791 = vmatprep.subr.mxu0 0.0
        %792 = vmatpush1.msra.mxu0 0.0
        %793 = vmatprep.subr.mxu0 0.0
        %794 = vmatpush1.msra.mxu0 0.0
        %795 = vmatprep.subr.mxu0 0.0
        %796 = vmatpush1.msra.mxu0 0.0
        %797 = vmatprep.mubr.f32.mxu0 0.0
        %798 = vmatmul.mubr.f32.gmra.mrb[0].mxu0 %v724
        %v799 = vpop.f32.mrb[0].mxu0
        %v800 = vadd.f32 %v712, %v799
        %v801 = vpop.f32.mrb[0].mxu0
        %802 = vmatprep.mubr.f32.mxu0 0.0
        %803 = vmatmul.mubr.f32.gmra.mrb[0].mxu0 %v726
        %v804 = vpop.f32.mrb[0].mxu0
        %v805 = vadd.f32 %v717, %v804
        %v806 = vpop.f32.mrb[0].mxu0
        %807 = vmatprep.mubr.f32.mxu0 0.0
        %808 = vmatmul.mubr.f32.gmra.mrb[0].mxu0 %v728
        %v809 = vpop.f32.mrb[0].mxu0
        %v810 = vadd.f32 %v722, %v809
        %v811 = vpop.f32.mrb[0].mxu0
        %812 = vdwg.mxu0
        %v813 = vtanh.pop %v800
        %v814 = vtanh.pop %v805
        %v815 = vtanh.pop %v810
        %v816 = vld [vmem:[%s1 + $0xd8] sm:$0x1]
        %818 = vset.pattern.permute.xlu0 50
        %819 = vperm.xlu0 %818, %v816
        %v820 = vpop.permute.xlu0 %819
        %v822 = vsel %vm246, %v816, 0
        %v825 = vsel %vm261, %v815, 0
        %827 = vmatprep.subr.mxu0 0.0
        %828 = vmatpush1.msra.mxu0 %v813
        %829 = vmatprep.subr.mxu0 0.0
        %830 = vmatpush1.msra.mxu0 %v814
        %831 = vmatprep.subr.mxu0 0.0
        %832 = vmatpush1.msra.mxu0 %v825
        %833 = vmatprep.subr.mxu0 0.0
        %834 = vmatpush1.msra.mxu0 0.0
        %835 = vmatprep.subr.mxu0 0.0
        %836 = vmatpush1.msra.mxu0 0.0
        %837 = vmatprep.subr.mxu0 0.0
        %838 = vmatpush1.msra.mxu0 0.0
        %839 = vmatprep.subr.mxu0 0.0
        %840 = vmatpush1.msra.mxu0 0.0
        %841 = vmatprep.subr.mxu0 0.0
        %842 = vmatpush1.msra.mxu0 0.0
        %843 = vmatprep.subr.mxu0 0.0
        %844 = vmatpush1.msra.mxu0 0.0
        %845 = vmatprep.subr.mxu0 0.0
        %846 = vmatpush1.msra.mxu0 0.0
        %847 = vmatprep.subr.mxu0 0.0
        %848 = vmatpush1.msra.mxu0 0.0
        %849 = vmatprep.subr.mxu0 0.0
        %850 = vmatpush1.msra.mxu0 0.0
        %851 = vmatprep.subr.mxu0 0.0
        %852 = vmatpush1.msra.mxu0 0.0
        %853 = vmatprep.subr.mxu0 0.0
        %854 = vmatpush1.msra.mxu0 0.0
        %855 = vmatprep.subr.mxu0 0.0
        %856 = vmatpush1.msra.mxu0 0.0
        %857 = vmatprep.subr.mxu0 0.0
        %858 = vmatpush1.msra.mxu0 0.0
        %859 = vmatprep.subr.mxu0 0.0
        %860 = vmatpush1.msra.mxu0 0.0
        %861 = vmatprep.subr.mxu0 0.0
        %862 = vmatpush1.msra.mxu0 0.0
        %863 = vmatprep.subr.mxu0 0.0
        %864 = vmatpush1.msra.mxu0 0.0
        %865 = vmatprep.subr.mxu0 0.0
        %866 = vmatpush1.msra.mxu0 0.0
        %867 = vmatprep.subr.mxu0 0.0
        %868 = vmatpush1.msra.mxu0 0.0
        %869 = vmatprep.subr.mxu0 0.0
        %870 = vmatpush1.msra.mxu0 0.0
        %871 = vmatprep.subr.mxu0 0.0
        %872 = vmatpush1.msra.mxu0 0.0
        %873 = vmatprep.subr.mxu0 0.0
        %874 = vmatpush1.msra.mxu0 0.0
        %875 = vmatprep.subr.mxu0 0.0
        %876 = vmatpush1.msra.mxu0 0.0
        %877 = vmatprep.subr.mxu0 0.0
        %878 = vmatpush1.msra.mxu0 0.0
        %879 = vmatprep.subr.mxu0 0.0
        %880 = vmatpush1.msra.mxu0 0.0
        %881 = vmatprep.subr.mxu0 0.0
        %882 = vmatpush1.msra.mxu0 0.0
        %883 = vmatprep.subr.mxu0 0.0
        %884 = vmatpush1.msra.mxu0 0.0
        %885 = vmatprep.subr.mxu0 0.0
        %886 = vmatpush1.msra.mxu0 0.0
        %887 = vmatprep.subr.mxu0 0.0
        %888 = vmatpush1.msra.mxu0 0.0
        %889 = vmatprep.subr.mxu0 0.0
        %890 = vmatpush1.msra.mxu0 0.0
        %891 = vmatprep.mubr.f32.mxu0 0.0
        %892 = vmatmul.mubr.f32.gmra.mrb[0].mxu0 %v822
        %v893 = vpop.f32.mrb[0].mxu0
        %v894 = vadd.f32 %v820, %v893
        %v895 = vpop.f32.mrb[0].mxu0
        %896 = vdwg.mxu0
        %897 = vst [vmem:[%s133] sm:$0x1] %v894
        %s898 = sand.u32 %s71, 1
        %s899 = scalar_lea.sflag [#allocation3], %s898
        %s900 = sand.u32 %s71, 1
        %s901 = scalar_lea.vmem [#allocation2], %s900
        // Predicated region
        $region29: #{tpu_custom_call.1} parent=27 // pred_check
          %p902 = pneg %p81
        $region30: #{tpu_custom_call.1} parent=27 // pred_check_branch
          %904 = sbr.rel (%p902) target = $region32
        $region31: #{tpu_custom_call.1} parent=27 // pred_region
          %s906 = ssub.s32 16, 16
          %907 = vsyncadd %s899, %s906
          %s908 = smul.addr %s16, 16
          %s909 = scalar_lea.hbm %s2, %s908
          %s911 = sshll.u32 %s901, 4
          %s912 = int_to_ptr.vmem [resolvable:$true] %s911
          %914 = dma.vmem_to_hbm [thread:$0]  %s912, 16, %s909, %s899
        $region32: #{tpu_custom_call.1} parent=27 // pred_fallthru
          _
      $region28: #{tpu_custom_call.1} parent=5 // pred_fallthru
        _
      %p915 = scmp.le.s32.totalorder 2, %s11
      // Predicated region
      $region33: #{tpu_custom_call.1} parent=5 // pred_check
        %p916 = pneg %p915
      $region34: #{tpu_custom_call.1} parent=5 // pred_check_branch
        %918 = sbr.rel (%p916) target = $region36
      $region35: #{tpu_custom_call.1} parent=5 // pred_region
        %s919 = ssub.s32 %s11, 2
        // Predicated region
        $region37: #{tpu_custom_call.1} parent=35 // pred_check
          %p920 = pneg %p87
        $region38: #{tpu_custom_call.1} parent=35 // pred_check_branch
          %922 = sbr.rel (%p920) target = $region40
        $region39: #{tpu_custom_call.1} parent=35 // pred_region
          %s923 = sand.u32 %s72, 1
          %s924 = scalar_lea.sflag [#allocation3], %s923
          %s925 = sand.u32 %s72, 1
          %s926 = scalar_lea.vmem [#allocation2], %s925
          %927 = dma.done %s924, 16
        $region40: #{tpu_custom_call.1} parent=35 // pred_fallthru
          _
      $region36: #{tpu_custom_call.1} parent=5 // pred_fallthru
        _
    $region6: #{tpu_custom_call.1} parent=1 // loop_footer
      %s15 = sadd.s32 1, %s11
    $region7: #{tpu_custom_call.1} parent=1 // loop_footer_branch
      %10 = sbr.rel target = $region3
    $region8: #{tpu_custom_call.1} parent=1 // loop_exit
      _
    %928 = vsyncpa [#allocation3], 1
    %s929 = scalar_lea.sflag [#allocation3], 1
    %930 = vsyncpa %s929, 1

</llo_original>
